<compile_context>
chip_gen: v5e
topology: v5e:2x2
jax: 0.10.0
libtpu: 0.0.40
codegen_flags: <defaults>
</compile_context>

<pallas_src>
import functools
import math

import jax
import jax.numpy as jnp
from jax.experimental import pallas as pl
from jax.experimental.pallas import tpu as pltpu


# ----------------------------------------------------------------------------
# Pallas kernel (use_rff=True path)
# ----------------------------------------------------------------------------
def _rff_kernel(x_ref, w_ref, b_ref, o_ref, *, scale, resident_bias):
    # One (TB, TN) output tile:  scale * cos(x @ w + b)
    # f32 MXU dot (K = F_in is tiny, so MXU is nowhere near the bottleneck);
    # bias-add, cos and scale run on the f32 VALU/EUP path.
    z = jnp.dot(x_ref[...], w_ref[...], preferred_element_type=jnp.float32)
    if resident_bias:
        # Bias is resident as (1, F_out); slice this tile's columns.
        tn = o_ref.shape[-1]
        col = pl.program_id(1) * tn
        if tn % 128 == 0:
            col = pl.multiple_of(col, 128)
        bias = b_ref[:, pl.ds(col, tn)]
    else:
        bias = b_ref[...]                     # (1, TN) blocked per tile
    z = z + bias                              # broadcasts over the batch tile
    o_ref[...] = (scale * jnp.cos(z)).astype(o_ref.dtype)


def _pick_tiles(B, F_out, tb, tn):
    """Clamp tiles to the array, keeping blocks (8,128)-friendly, and keep the
    grid >= 2 programs along a parallel axis when possible (v7x megacore)."""
    tb = tb if B > tb else B
    tn = tn if F_out > tn else F_out
    if tb >= B and tn >= F_out:
        # 1x1 grid would leave one v7x TensorCore idle; split if we can do so
        # while keeping tn a multiple of 128 / tb a multiple of 8.
        if F_out % 256 == 0:
            tn = F_out // 2
        elif B % 16 == 0:
            tb = B // 2
    return tb, tn


def rff_forward(obs, w, b, scale, *, tb=512, tn=1024, out_dtype=None):
    """scale * cos(obs @ w + b), tiled over (batch, out_features)."""
    B, F_in = obs.shape
    F_in_w, F_out = w.shape
    assert F_in == F_in_w
    assert b.shape == (1, F_out)
    if out_dtype is None:
        out_dtype = obs.dtype

    tb, tn = _pick_tiles(B, F_out, tb, tn)
    grid = (pl.cdiv(B, tb), pl.cdiv(F_out, tn))

    # Bias: keep the whole (tiny) vector resident in VMEM when it divides
    # cleanly into column tiles; otherwise fall back to a per-tile block.
    resident_bias = (F_out % tn) == 0
    if resident_bias:
        bias_spec = pl.BlockSpec((1, F_out), lambda i, j: (0, 0))
    else:
        bias_spec = pl.BlockSpec((1, tn), lambda i, j: (0, j))

    kernel = functools.partial(
        _rff_kernel, scale=float(scale), resident_bias=resident_bias)

    return pl.pallas_call(
        kernel,
        out_shape=jax.ShapeDtypeStruct((B, F_out), out_dtype),
        grid=grid,
        in_specs=[
            pl.BlockSpec((tb, F_in), lambda i, j: (i, 0)),   # obs row tile
            pl.BlockSpec((F_in, tn), lambda i, j: (0, j)),   # weight column tile
            bias_spec,                                       # bias (resident or tiled)
        ],
        out_specs=pl.BlockSpec((tb, tn), lambda i, j: (i, j)),
        compiler_params=pltpu.CompilerParams(
            dimension_semantics=("parallel", "parallel")),
    )(obs, w, b)


# ----------------------------------------------------------------------------
# DummyEncoder (JAX/Pallas version)
# ----------------------------------------------------------------------------
class DummyEncoder:
    def __init__(self, out_feat, use_rff=False, rff_out_features=None, key=None):
        self.use_rff = use_rff
        if self.use_rff:
            # mirrors: assert out_feat == input_rff.in_features
            #          out_feat = input_rff.out_features
            in_feat = out_feat
            out_feat = rff_out_features
            key_w, key_b = jax.random.split(key)
            # deterministic synthetic RFF parameters (fixed, non-trainable)
            self.w = jax.random.normal(key_w, (in_feat, out_feat), jnp.float32)
            self.b = jax.random.uniform(
                key_b, (1, out_feat), jnp.float32, 0.0, 2.0 * math.pi
            )
            self.scale = math.sqrt(2.0 / out_feat)   # trace-time constant
        self.out_features = out_feat

    def __call__(self, obs):
        if self.use_rff:
            return rff_forward(obs, self.w, self.b, self.scale)
        # use_rff == False: forward(obs) = obs -- no kernel, no copy.
        return obs

    def copy_weights_from(self, source):
        pass


# ----------------------------------------------------------------------------
# Reference (pure JAX) for correctness check
# ----------------------------------------------------------------------------
def rff_ref(obs, w, b, scale):
    return scale * jnp.cos(obs.astype(jnp.float32) @ w + b)


if __name__ == "__main__":
    key = jax.random.PRNGKey(0)
    k_obs, k_enc, k_obs2, k_enc2 = jax.random.split(key, 4)

    # --- Path 1: use_rff=False -> identity (no kernel) ---------------------
    B, F_IN, F_OUT = 8, 32, 128
    obs = jax.random.normal(k_obs, (B, F_IN), jnp.float32)
    enc_id = DummyEncoder(out_feat=F_IN, use_rff=False)
    out_id = jax.block_until_ready(enc_id(obs))
    assert out_id.shape == obs.shape
    assert jnp.allclose(out_id, obs)

    # --- Path 2: use_rff=True -> RFF projection (small shapes, 1x1 grid) ---
    enc_rff = DummyEncoder(out_feat=F_IN, use_rff=True,
                           rff_out_features=F_OUT, key=k_enc)
    out_rff = jax.block_until_ready(enc_rff(obs))
    assert out_rff.shape == (B, F_OUT)
    ref = rff_ref(obs, enc_rff.w, enc_rff.b, enc_rff.scale)
    # f32 matmul -> tight tolerance
    assert jnp.allclose(out_rff, ref, atol=1e-5, rtol=1e-5), float(
        jnp.max(jnp.abs(out_rff - ref)))

    # --- Path 3: use_rff=True at larger shapes (exercises the split grid) --
    B2, F_OUT2 = 512, 1024
    obs2 = jax.random.normal(k_obs2, (B2, F_IN), jnp.float32)
    enc_rff2 = DummyEncoder(out_feat=F_IN, use_rff=True,
                            rff_out_features=F_OUT2, key=k_enc2)
    out_rff2 = jax.block_until_ready(enc_rff2(obs2))
    assert out_rff2.shape == (B2, F_OUT2)
    ref2 = rff_ref(obs2, enc_rff2.w, enc_rff2.b, enc_rff2.scale)
    assert jnp.allclose(out_rff2, ref2, atol=1e-5, rtol=1e-5), float(
        jnp.max(jnp.abs(out_rff2 - ref2)))

    print("KERNEL_OK")
</pallas_src>

<mosaic_0001>
module attributes {stable_mosaic.version = 11 : i64} {
  func.func @_rff_kernel(%arg0: i32, %arg1: i32, %arg2: memref<8x32xf32, #tpu.memory_space<vmem>>, %arg3: memref<32x128xf32, #tpu.memory_space<vmem>>, %arg4: memref<1x128xf32, #tpu.memory_space<vmem>>, %arg5: memref<8x128xf32, #tpu.memory_space<vmem>>) attributes {dimension_semantics = [#tpu.dimension_semantics<parallel>, #tpu.dimension_semantics<parallel>], iteration_bounds = array<i64: 1, 1>, scalar_prefetch = 0 : i64, scratch_operands = 0 : i64, tpu.core_type = #tpu.core_type<tc>, window_params = [{transform_indices = @transform_0, window_bounds = array<i64: 8, 32>}, {transform_indices = @transform_1, window_bounds = array<i64: 32, 128>}, {pipeline_mode = #tpu.pipeline_mode<synchronous>, transform_indices = @transform_2, window_bounds = array<i64: 1, 128>}, {transform_indices = @transform_3, window_bounds = array<i64: 8, 128>}]} {
    %c0 = arith.constant 0 : index
    %c0_0 = arith.constant 0 : index
    %0 = vector.load %arg2[%c0, %c0_0] : memref<8x32xf32, #tpu.memory_space<vmem>>, vector<8x32xf32>
    %c0_1 = arith.constant 0 : index
    %c0_2 = arith.constant 0 : index
    %1 = vector.load %arg3[%c0_1, %c0_2] : memref<32x128xf32, #tpu.memory_space<vmem>>, vector<32x128xf32>
    %cst = arith.constant dense<0.000000e+00> : vector<8x128xf32>
    %2 = tpu.matmul %0, %1, %cst {dimension_numbers = #tpu.dot_dimension_numbers<[1], [0], [0], [1], [0, 0, 1, 1], [], []>} : vector<8x32xf32>, vector<32x128xf32>, vector<8x128xf32> -> vector<8x128xf32>
    %c128_i32 = arith.constant 128 : i32
    %3 = arith.muli %arg1, %c128_i32 : i32
    %4 = tpu.assume_multiple %3, 128 : i32
    %c0_3 = arith.constant 0 : index
    %5 = arith.index_cast %4 : i32 to index
    %6 = vector.load %arg4[%c0_3, %5] : memref<1x128xf32, #tpu.memory_space<vmem>>, vector<1x128xf32>
    %7 = vector.broadcast %6 : vector<1x128xf32> to vector<8x128xf32>
    %8 = arith.addf %2, %7 : vector<8x128xf32>
    %9 = math.cos %8 : vector<8x128xf32>
    %cst_4 = arith.constant 1.250000e-01 : f32
    %10 = vector.broadcast %cst_4 : f32 to vector<8x128xf32>
    %11 = arith.mulf %10, %9 : vector<8x128xf32>
    %c0_5 = arith.constant 0 : index
    %c0_6 = arith.constant 0 : index
    %12 = vector.load %arg5[%c0_5, %c0_6] : memref<8x128xf32, #tpu.memory_space<vmem>>, vector<8x128xf32>
    tpu.vector_store %arg5[%c0_5, %c0_6], %11 {strides = array<i32>} : memref<8x128xf32, #tpu.memory_space<vmem>>, vector<8x128xf32>,
    return
  }
  func.func @transform_0(%arg0: i32, %arg1: i32) -> (i32, i32) {
    %c0_i32 = arith.constant 0 : i32
    %c0_i32_0 = arith.constant 0 : i32
    return %arg0, %c0_i32 : i32, i32
  }
  func.func @transform_1(%arg0: i32, %arg1: i32) -> (i32, i32) {
    %c0_i32 = arith.constant 0 : i32
    %c0_i32_0 = arith.constant 0 : i32
    return %c0_i32, %arg1 : i32, i32
  }
  func.func @transform_2(%arg0: i32, %arg1: i32) -> (i32, i32) {
    %c0_i32 = arith.constant 0 : i32
    %c0_i32_0 = arith.constant 0 : i32
    %c0_i32_1 = arith.constant 0 : i32
    return %c0_i32, %c0_i32_0 : i32, i32
  }
  func.func @transform_3(%arg0: i32, %arg1: i32) -> (i32, i32) {
    %c0_i32 = arith.constant 0 : i32
    return %arg0, %arg1 : i32, i32
  }
}

</mosaic_0001>

<llo_original>
// kernel: tpu_custom_call.1
$region0: #{tpu_custom_call.1}
  #allocation0 [shape = 'u32[]', space=smem, size = 0x4, offset = 0x4, fixed_abs, tag = 'smem constant byte address 0x4 - core index']
  #allocation1 [shape = 'u32[72,128]{1,0:T(1,128)}', space=vmem, size = 0x9000, scoped, tag = 'internal scratch']
  %s0 = inlined_call_operand.hbm [shape: f32[8,32], index: 0, kind: input, shape index: {}]
  %s1 = inlined_call_operand.hbm [shape: f32[32,128], index: 1, kind: input, shape index: {}]
  %s2 = inlined_call_operand.vmem [shape: f32[1,128], index: 2, kind: input, shape index: {}]
  %s3 = inlined_call_operand.hbm [shape: f32[8,128], index: 3, kind: output, shape index: {}]
  %s4 = sld [smem:[#allocation0]]
  $region30: #{tpu_custom_call.1} parent=0
    _
  %s6 = ssub.s32 1, %s4
  %s7 = scalar_select 0, %s6, %s4
  $region1: #{tpu_custom_call.1} parent=0
    #allocation2 [shape = 'u8[4096]{0}', space=vmem, size = 0x1000, scoped, tag = 'input window, operand 0, single buffered']
    #allocation3 [shape = 's32[1]{0}', space=sflag, size = 0x4, scoped, tag = 'scoped memory for tpu_custom_call.1']
    #allocation4 [shape = 's32[1]{0}', space=sflag, size = 0x4, scoped, tag = 'scoped memory for tpu_custom_call.1']
    #allocation5 [shape = 'u8[16384]{0}', space=vmem, size = 0x4000, scoped, tag = 'input window, operand 1, single buffered']
    #allocation6 [shape = 's32[1]{0}', space=sflag, size = 0x4, scoped, tag = 'scoped memory for tpu_custom_call.1']
    #allocation7 [shape = 'u8[4096]{0}', space=vmem, size = 0x1000, scoped, tag = 'output window, operand 0, single buffered']
    %8 = vsyncpa [#allocation3], 0
    %9 = vsyncpa [#allocation6], 0
    %10 = vsyncpa [#allocation4], 0
    // Predicated region
    $region2: #{tpu_custom_call.1} parent=1 // pred_check
      _
    $region3: #{tpu_custom_call.1} parent=1 // pred_check_branch
      %12 = sbr.rel (0) target = $region5
    $region4: #{tpu_custom_call.1} parent=1 // pred_region
      %14 = vsyncadd [#allocation3], 0
      %s16 = sshll.u32 %s0, 4
      %s17 = int_to_ptr.hbm [resolvable:$true] %s16
      %s18 = sshll.u32 [#allocation2], 4
      %s19 = int_to_ptr.vmem [resolvable:$true] %s18
      %21 = dma.hbm_to_vmem [thread:$0]  %s17, 128, %s19, [#allocation3]
    $region5: #{tpu_custom_call.1} parent=1 // pred_fallthru
      _
    // Predicated region
    $region6: #{tpu_custom_call.1} parent=1 // pred_check
      _
    $region7: #{tpu_custom_call.1} parent=1 // pred_check_branch
      %23 = sbr.rel (0) target = $region9
    $region8: #{tpu_custom_call.1} parent=1 // pred_region
      %25 = vsyncadd [#allocation6], 0
      %s26 = sshll.u32 %s1, 4
      %s27 = int_to_ptr.hbm [resolvable:$true] %s26
      %s28 = sshll.u32 [#allocation5], 4
      %s29 = int_to_ptr.vmem [resolvable:$true] %s28
      %34 = dma.hbm_to_vmem [thread:$0]  %s27, 512, %s29, [#allocation6], 128, 128, 8
    $region9: #{tpu_custom_call.1} parent=1 // pred_fallthru
      _
    // Predicated region
    $region10: #{tpu_custom_call.1} parent=1 // pred_check
      _
    $region11: #{tpu_custom_call.1} parent=1 // pred_check_branch
      %36 = sbr.rel (0) target = $region13
    $region12: #{tpu_custom_call.1} parent=1 // pred_region
      _
    $region13: #{tpu_custom_call.1} parent=1 // pred_fallthru
      _
    // Predicated region
    $region14: #{tpu_custom_call.1} parent=1 // pred_check
      _
    $region15: #{tpu_custom_call.1} parent=1 // pred_check_branch
      %38 = sbr.rel (0) target = $region17
    $region16: #{tpu_custom_call.1} parent=1 // pred_region
      %40 = dma.done [#allocation3], 128
    $region17: #{tpu_custom_call.1} parent=1 // pred_fallthru
      _
    // Predicated region
    $region18: #{tpu_custom_call.1} parent=1 // pred_check
      _
    $region19: #{tpu_custom_call.1} parent=1 // pred_check_branch
      %42 = sbr.rel (0) target = $region21
    $region20: #{tpu_custom_call.1} parent=1 // pred_region
      %44 = dma.done [#allocation6], 512
    $region21: #{tpu_custom_call.1} parent=1 // pred_fallthru
      _
    %v45 = vld [vmem:[#allocation2] sm:$0xff]
    %v46 = vld [vmem:[#allocation5] sm:$0xff]
    %v47 = vld [vmem:[#allocation5 + $0x8] sm:$0xff]
    %v48 = vld [vmem:[#allocation5 + $0x10] sm:$0xff]
    %v49 = vld [vmem:[#allocation5 + $0x18] sm:$0xff]
    %s50 = smul.u32 0, 128
    %s51 = sshra.s32 %s50, 7
    %s52 = sand.u32 %s50, 127
    %s53 = scalar_lea.vmem %s2, %s51
    %v54 = vld [vmem:[%s53] sm:$0x1]
    %v56 = vperm.slane %v54, 0
    %vm58 = vcmask 261120
    %v60 = vsel %vm58, %v45, 0
    %62 = vmatpush.msra.mxu0 0.0
    %63 = vmatpush.msra.mxu0 0.0
    %64 = vmatpush.msra.mxu0 0.0
    %65 = vmatpush.msra.mxu0 0.0
    %66 = vmatpush.msra.mxu0 0.0
    %67 = vmatpush.msra.mxu0 0.0
    %68 = vmatpush.msra.mxu0 0.0
    %69 = vmatpush.msra.mxu0 0.0
    %70 = vmatpush.msra.mxu0 0.0
    %71 = vmatpush.msra.mxu0 0.0
    %72 = vmatpush.msra.mxu0 0.0
    %73 = vmatpush.msra.mxu0 0.0
    %74 = vmatpush.msra.mxu0 %v49
    %75 = vmatpush.msra.mxu0 %v48
    %76 = vmatpush.msra.mxu0 %v47
    %77 = vmatpush.msra.mxu0 %v46
    %78 = vmatmul.f32.gmra.mxu0 %v60
    %v79 = vpop.f32.mrf.mxu0
    %v80 = vadd.f32 %v56, %v79
    %81 = vdwg.mxu0
    %v82 = vand.u32 2147483647, %v80
    %vm83 = vcmp.le.f32.partialorder %v82, 0.7853982
    %vm84 = vcmp.lt.s32.totalorder %v80, 0
    %v85 = vand.u32 %v80, 2139095040
    %v86 = vshrl.u32 %v85, 23
    %v87 = vsub.s32 %v86, 127
    %v88 = vand.u32 2147483647, %v80
    %v89 = vand.u32 %v88, 8388607
    %v90 = vor.u32 %v89, 8388608
    %v91 = vsub.s32 0, %v90
    %v92 = vadd.s32 %v87, 1
    %vm93 = vcmp.gt.s32.totalorder %v92, 0
    %v94 = vsel %vm93, %v92, 0
    %v95 = vshrl.u32 %v94, 5
    %v96 = vand.u32 %v94, 31
    %v97 = vsub.s32 32, %v96
    %v98 = vshrl.u32 683565275, %v97
    %v99 = vshll.u32 683565275, %v96
    %v100 = vshrl.u32 2475754826, %v97
    %v101 = vor.u32 %v99, %v100
    %v102 = vshll.u32 2475754826, %v96
    %v103 = vshrl.u32 2131351028, %v97
    %v104 = vor.u32 %v102, %v103
    %v105 = vshll.u32 2131351028, %v96
    %v106 = vshrl.u32 2102212464, %v97
    %v107 = vor.u32 %v105, %v106
    %v108 = vshll.u32 2102212464, %v96
    %v109 = vshrl.u32 920167782, %v97
    %v110 = vor.u32 %v108, %v109
    %v111 = vshll.u32 920167782, %v96
    %v112 = vshrl.u32 1326507024, %v97
    %v113 = vor.u32 %v111, %v112
    %vm114 = vcmp.lt.s32.totalorder %v95, 1
    %vm115 = vcmp.lt.s32.totalorder %v95, 2
    %vm116 = vcmp.lt.s32.totalorder %v95, 3
    %vm117 = vcmp.lt.s32.totalorder %v95, 4
    %v118 = vsel %vm114, %v98, %v101
    %v119 = vsel %vm117, %v107, 2102212464
    %v120 = vsel %vm116, %v104, %v119
    %v121 = vsel %vm115, %v118, %v120
    %v122 = vsel %vm114, %v101, %v104
    %v123 = vsel %vm117, %v110, 920167782
    %v124 = vsel %vm116, %v107, %v123
    %v125 = vsel %vm115, %v122, %v124
    %v126 = vsel %vm114, %v104, %v107
    %v127 = vsel %vm117, %v113, 1326507024
    %v128 = vsel %vm116, %v110, %v127
    %v129 = vsel %vm115, %v126, %v128
    %v130 = vshll.u32 %v90, 8
    %v131 = vand.u32 %v130, 65535
    %v132 = vshrl.u32 %v130, 16
    %v133 = vand.u32 %v129, 65535
    %v134 = vshrl.u32 %v129, 16
    %v135 = vmul.u32 %v131, %v133
    %v136 = vmul.u32 %v131, %v134
    %v137 = vmul.u32 %v132, %v133
    %v138 = vmul.u32 %v132, %v134
    %v139 = vshll.u32 %v136, 16
    %v140 = vshrl.u32 %v136, 16
    %v141 = vshll.u32 %v137, 16
    %v142 = vshrl.u32 %v137, 16
    %vm143 = vc.u32 %v135, %v139
    %v144 = vsel %vm143, 1, 0
    %v145 = vadd.s32 %v135, %v139
    %v146 = vadd.s32 %v138, %v144
    %vm147 = vc.u32 %v145, %v141
    %v148 = vsel %vm147, 1, 0
    %v149 = vadd.s32 %v145, %v141
    %v150 = vadd.s32 %v146, %v148
    %v151 = vadd.s32 %v150, %v140
    %v152 = vadd.s32 %v151, %v142
    %v153 = vand.u32 %v130, 65535
    %v154 = vshrl.u32 %v130, 16
    %v155 = vand.u32 %v125, 65535
    %v156 = vshrl.u32 %v125, 16
    %v157 = vmul.u32 %v153, %v155
    %v158 = vmul.u32 %v153, %v156
    %v159 = vmul.u32 %v154, %v155
    %v160 = vmul.u32 %v154, %v156
    %v161 = vshll.u32 %v158, 16
    %v162 = vshrl.u32 %v158, 16
    %v163 = vshll.u32 %v159, 16
    %v164 = vshrl.u32 %v159, 16
    %vm165 = vc.u32 %v157, %v161
    %v166 = vsel %vm165, 1, 0
    %v167 = vadd.s32 %v157, %v161
    %v168 = vadd.s32 %v160, %v166
    %vm169 = vc.u32 %v167, %v163
    %v170 = vsel %vm169, 1, 0
    %v171 = vadd.s32 %v167, %v163
    %v172 = vadd.s32 %v168, %v170
    %v173 = vadd.s32 %v172, %v162
    %v174 = vadd.s32 %v173, %v164
    %v175 = vmul.u32 %v130, %v121
    %v176 = vadd.s32 %v152, %v171
    %vm177 = vc.u32 %v152, %v171
    %v178 = vadd.s32 %v174, 1
    %v179 = vsel %vm177, %v178, %v174
    %v180 = vadd.s32 %v175, %v179
    %v181 = vadd.s32 %v180, 536870912
    %v182 = vshrl.u32 %v181, 30
    %v183 = vshll.u32 %v182, 30
    %v184 = vsub.s32 %v180, %v183
    %vm185 = vcmp.lt.s32.totalorder %v184, 0
    %v186 = vsub.s32 0, %v184
    %v187 = vsel %vm185, %v186, %v184
    %v188 = vclz %v187
    %v189 = vsub.s32 %v188, 2
    %vm190 = vcmp.gt.s32.totalorder 0, %v189
    %v191 = vsel %vm190, 0, %v189
    %v192 = vsub.s32 32, %v191
    %v193 = vshll.u32 %v184, %v191
    %v194 = vshrl.u32 %v176, %v192
    %v195 = vor.u32 %v193, %v194
    %v196 = vsub.s32 4294967266, %v191
    %v197 = vadd.s32 %v196, 127
    %v198 = vshll.u32 %v197, 23
    %v199 = vor.u32 4788187, %v198
    %v200 = vand.u32 2147483647, %v199
    %v202 = vcvt.s32.f32 %v195
    %v203 = vmul.f32 %v202, %v200
    %v204 = vxor.u32 %v203, 2147483648
    %v205 = vsel %vm84, %v204, %v203
    %v206 = vsub.s32 4, %v182
    %v207 = vsel %vm84, %v206, %v182
    %v208 = vsel %vm83, %v80, %v205
    %v209 = vsel %vm83, 0, %v207
    %v210 = vmul.f32 %v208, %v208
    %v211 = vmul.f32 %v210, -0.001358992
    %v212 = vadd.f32 %v211, 0.041655596
    %v213 = vmul.f32 %v210, %v212
    %v214 = vadd.f32 %v213, -0.4999988
    %v215 = vmul.f32 %v210, %v214
    %v216 = vadd.f32 1.0, %v215
    %v217 = vmul.f32 %v208, %v208
    %v218 = vmul.f32 %v217, -0.00019511016
    %v219 = vadd.f32 %v218, 0.008332121
    %v220 = vmul.f32 %v217, %v219
    %v221 = vadd.f32 %v220, -0.16666654
    %v222 = vmul.f32 %v217, %v221
    %v223 = vadd.f32 %v222, 1.0
    %v224 = vmul.f32 %v223, %v208
    %vm225 = vweird.f32 %v80
    %v226 = vand.u32 %v209, 3
    %vm227 = vcmp.lt.s32.totalorder %v226, 2
    %vm228 = vcmp.eq.s32.totalorder %v226, 0
    %v229 = vxor.u32 %v224, 2147483648
    %v230 = vsel %vm228, %v216, %v229
    %vm231 = vcmp.eq.s32.totalorder %v226, 2
    %v232 = vxor.u32 %v216, 2147483648
    %v233 = vsel %vm231, %v232, %v224
    %v234 = vsel %vm227, %v230, %v233
    %v235 = vsel %vm225, nan, %v234
    %v236 = vmul.f32 %v235, 0.125
    %237 = vst [vmem:[#allocation7] sm:$0xff] %v236
    // Predicated region
    $region22: #{tpu_custom_call.1} parent=1 // pred_check
      _
    $region23: #{tpu_custom_call.1} parent=1 // pred_check_branch
      %239 = sbr.rel (0) target = $region25
    $region24: #{tpu_custom_call.1} parent=1 // pred_region
      %241 = vsyncadd [#allocation4], 0
      %s243 = sshll.u32 [#allocation7], 4
      %s244 = int_to_ptr.vmem [resolvable:$true] %s243
      %s245 = sshll.u32 %s3, 4
      %s246 = int_to_ptr.hbm [resolvable:$true] %s245
      %248 = dma.vmem_to_hbm [thread:$0]  %s244, 128, %s246, [#allocation4]
    $region25: #{tpu_custom_call.1} parent=1 // pred_fallthru
      _
    // Predicated region
    $region26: #{tpu_custom_call.1} parent=1 // pred_check
      _
    $region27: #{tpu_custom_call.1} parent=1 // pred_check_branch
      %250 = sbr.rel (0) target = $region29
    $region28: #{tpu_custom_call.1} parent=1 // pred_region
      %252 = dma.done [#allocation4], 128
    $region29: #{tpu_custom_call.1} parent=1 // pred_fallthru
      _
    %253 = vsyncpa [#allocation3], 1
    %254 = vsyncpa [#allocation6], 1
    %255 = vsyncpa [#allocation4], 1

</llo_original>
